<compile_context>
chip_gen: v7x
topology: tpu7x:2x2x1
jax: 0.10.0
libtpu: 0.0.40
codegen_flags: <defaults>
</compile_context>

<pallas_src>
import functools

import jax
import jax.numpy as jnp
from jax.experimental import pallas as pl
from jax.experimental.pallas import tpu as pltpu

# ----------------------------- config (args) ---------------------------------
EMBED_SIZE = 32        # args.embed_size
NUM_NEG = 64           # args.num_neg_samples
L2_LAMBDA = 1e-3       # args.l2_lambda
BATCH = 8

# entity vocab sizes (dataset.*.vocab_size)
ENTITIES = {"student": 20, "resource": 24, "course": 12, "question": 16}
# relation -> (head entity, tail entity)
RELATIONS = {"study": ("student", "resource"),
             "belong": ("resource", "course"),
             "matched": ("resource", "question")}


# ----------------------------- Pallas kernel ---------------------------------
def _softplus(x):
    # Stable softplus: max(x,0) + log(1 + exp(-|x|)).  exp argument <= 0 so it never
    # overflows; equals -log(sigmoid(-x)).
    return jnp.maximum(x, 0.0) + jnp.log(1.0 + jnp.exp(-jnp.abs(x)))


def _fused_kg_kernel(num_neg, head_ref, tail_ref, negt_ref, rel_ref, bm_ref,
                     loss_ref, l2_ref):
    """One grid step == one relation.  Block shapes carry a leading 1 (relation)."""
    head = head_ref[0]        # [B, E]
    tail = tail_ref[0]        # [B, E]
    neg_t = negt_ref[0]       # [E, S_pad]   (padded columns are all-zero)
    rel = rel_ref[0]          # [1, E]
    bm = bm_ref[0]            # [B, 2]   col0 = relation_bias, col1 = row mask
    bias = bm[:, 0:1]         # [B, 1]
    mask = bm[:, 1:2]         # [B, 1]   1.0 = valid row (tail_idx >= 0), 0.0 = masked

    # example_vec = head_vec + relation_vec
    example = head + rel                                                  # [B, E]

    # pos_logits = <example, tail> + bias ; pos_loss = -log(sigmoid(.)) = softplus(-.)
    pos_logits = jnp.sum(example * tail, axis=-1, keepdims=True) + bias   # [B, 1]
    pos_loss = _softplus(-pos_logits)                                     # [B, 1]

    # neg_logits = example @ neg^T + bias ; neg_loss = sum(-log(sigmoid(-.))) = sum(softplus(.))
    neg_logits = jnp.dot(example, neg_t,
                         preferred_element_type=jnp.float32) + bias       # [B, S_pad]
    b, s_pad = neg_logits.shape
    col = jax.lax.broadcasted_iota(jnp.int32, (b, s_pad), 1)
    valid_col = (col < num_neg).astype(jnp.float32)                       # mask lane padding
    neg_loss = jnp.sum(_softplus(neg_logits) * valid_col,
                       axis=-1, keepdims=True)                            # [B, 1]

    # masked mean over valid rows.  (If every row of a relation is masked, PyTorch skips
    # the relation entirely; here it contributes 0 — deliberate, documented difference.)
    per_example = (pos_loss + neg_loss) * mask                            # [B, 1]
    total = jnp.sum(per_example, axis=0, keepdims=True)                   # [1, 1]
    denom = jnp.maximum(jnp.sum(mask, axis=0, keepdims=True), 1.0)        # [1, 1]
    loss_ref[0] = total / denom

    # fused L2 regularization: ||head||_F + ||tail||_F + ||neg||_F
    # (masked rows excluded, matching PyTorch which filters rows before the gather;
    #  zero-padded negative columns contribute nothing.)
    def sq_sum(x, row_mask=None):
        sq = x * x
        if row_mask is not None:
            sq = sq * row_mask
        return jnp.sum(jnp.sum(sq, axis=-1, keepdims=True), axis=0, keepdims=True)

    l2_ref[0] = (jnp.sqrt(sq_sum(head, mask)) +
                 jnp.sqrt(sq_sum(tail, mask)) +
                 jnp.sqrt(sq_sum(neg_t)))


def fused_kg_neg_loss_pallas(head, tail, neg, rel, bias, mask):
    """head/tail [R,B,E], neg [R,S,E], rel [R,1,E], bias [R,B], mask [R,B] (float)
    -> (per-relation loss [R], per-relation L2 norm sum [R])."""
    r, b, e = head.shape
    s = neg.shape[1]
    s_pad = ((s + 127) // 128) * 128

    # Pre-transpose negatives to [E, S] (MXU-friendly contraction) and lane-pad S -> 128.
    neg_t = jnp.transpose(neg.astype(jnp.float32), (0, 2, 1))             # [R, E, S]
    if s_pad != s:
        neg_t = jnp.pad(neg_t, ((0, 0), (0, 0), (0, s_pad - s)))          # [R, E, S_pad]

    # Pack bias and mask into a single small operand (one DMA instead of two).
    bm = jnp.stack([bias, mask], axis=-1).astype(jnp.float32)             # [R, B, 2]

    loss, l2 = pl.pallas_call(
        functools.partial(_fused_kg_kernel, s),
        out_shape=(jax.ShapeDtypeStruct((r, 1, 1), jnp.float32),
                   jax.ShapeDtypeStruct((r, 1, 1), jnp.float32)),
        grid_spec=pltpu.PrefetchScalarGridSpec(
            num_scalar_prefetch=0,
            grid=(r,),
            in_specs=[
                pl.BlockSpec((1, b, e), lambda i: (i, 0, 0)),       # head
                pl.BlockSpec((1, b, e), lambda i: (i, 0, 0)),       # tail
                pl.BlockSpec((1, e, s_pad), lambda i: (i, 0, 0)),   # neg^T
                pl.BlockSpec((1, 1, e), lambda i: (i, 0, 0)),       # relation vec
                pl.BlockSpec((1, b, 2), lambda i: (i, 0, 0)),       # bias+mask
            ],
            out_specs=[
                pl.BlockSpec((1, 1, 1), lambda i: (i, 0, 0)),
                pl.BlockSpec((1, 1, 1), lambda i: (i, 0, 0)),
            ]),
        compiler_params=pltpu.CompilerParams(
            dimension_semantics=("parallel",)),   # v7x: split relations across 2 TCs
    )(head.astype(jnp.float32), tail.astype(jnp.float32), neg_t,
      rel.astype(jnp.float32), bm)
    return loss[:, 0, 0], l2[:, 0, 0]


# ----------------------------- parameter init --------------------------------
def init_params(key):
    params = {}
    initrange = 0.5 / EMBED_SIZE
    keys = iter(jax.random.split(key, 16))
    # entity embeddings: [vocab_size + 1, E], uniform(-initrange, initrange)
    for e, vs in ENTITIES.items():
        params[e] = jax.random.uniform(next(keys), (vs + 1, EMBED_SIZE),
                                       jnp.float32, -initrange, initrange)
    # relation vectors [1, E], relation biases [tail_vocab + 1, 1] (zeros),
    # and tail distribution (power 0.75, normalized)
    for r, (_, et) in RELATIONS.items():
        params[r] = jax.random.uniform(next(keys), (1, EMBED_SIZE),
                                       jnp.float32, -initrange, initrange)
        params[r + "_bias"] = jnp.zeros((ENTITIES[et] + 1, 1), jnp.float32)
        raw = jax.random.uniform(next(keys), (ENTITIES[et],), jnp.float32,
                                 0.1, 1.0)
        d = raw ** 0.75
        params[r + "_distrib"] = d / d.sum()
    return params


# ----------------------------- model forward ---------------------------------
def _gather_relation_inputs(params, entity_head, relation, entity_tail,
                            head_idxs, tail_idxs, neg_idxs):
    # PyTorch filters rows with tail_idx < 0; JAX needs static shapes, so we gather
    # the padding row for invalid indices and zero their contribution in-kernel.
    mask = tail_idxs >= 0
    pad_row = ENTITIES[entity_tail]            # padding_idx = -1 == last row
    safe_tail = jnp.where(mask, tail_idxs, pad_row)
    safe_head = jnp.where(mask, head_idxs, 0)

    head_vec = params[entity_head][safe_head]                  # [B, E]
    tail_vec = params[entity_tail][safe_tail]                  # [B, E]
    rel_vec = params[relation]                                 # [1, E]
    rel_bias = params[relation + "_bias"][safe_tail][:, 0]     # [B]
    neg_vec = params[entity_tail][neg_idxs]                    # [S, E]
    return head_vec, tail_vec, neg_vec, rel_vec, rel_bias, mask.astype(jnp.float32)


def compute_loss(params, batch_idxs, neg_idxs_by_relation):
    """batch_idxs: [B, 4] int32 rows = (student, resource, course, question)."""
    student_idxs = batch_idxs[:, 0]
    resource_idxs = batch_idxs[:, 1]
    course_idxs = batch_idxs[:, 2]
    question_idxs = batch_idxs[:, 3]

    triples = [("student", "study", "resource", student_idxs, resource_idxs),
               ("resource", "belong", "course", resource_idxs, course_idxs),
               ("resource", "matched", "question", resource_idxs, question_idxs)]

    gathered = [
        _gather_relation_inputs(params, eh, rl, et, hi, ti,
                                neg_idxs_by_relation[rl])
        for eh, rl, et, hi, ti in triples
    ]
    head, tail, neg, rel, bias, mask = (jnp.stack(x) for x in zip(*gathered))

    # ONE fused Pallas call for all three relations (loss + L2 norms).
    loss_r, l2_r = fused_kg_neg_loss_pallas(head, tail, neg, rel, bias, mask)

    loss = jnp.sum(loss_r)
    if L2_LAMBDA > 0:
        # NOTE: if a relation had *all* rows masked, PyTorch skips its neg_vec norm too;
        # here that relation still contributes ||neg_vec|| — deliberate small difference.
        loss = loss + L2_LAMBDA * jnp.sum(l2_r)
    return loss


def sample_negatives(key, params):
    # torch.multinomial(distrib, num_samples, replacement=True) equivalent.
    # TODO(synk): stateful sampling RNG has no Pallas hot-path role; kept in JAX glue.
    out = {}
    for i, (r, (_, et)) in enumerate(RELATIONS.items()):
        k = jax.random.fold_in(key, i)
        out[r] = jax.random.choice(k, ENTITIES[et], (NUM_NEG,), replace=True,
                                   p=params[r + "_distrib"])
    return out


# ----------------------------- main -------------------------------------------
if __name__ == "__main__":
    root = jax.random.PRNGKey(0)
    pkey, bkey, nkey = jax.random.split(root, 3)

    params = init_params(pkey)

    # deterministic batch of valid (non-negative) indices
    cols = []
    for i, e in enumerate(["student", "resource", "course", "question"]):
        cols.append(jax.random.randint(jax.random.fold_in(bkey, i), (BATCH,),
                                       0, ENTITIES[e]))
    batch_idxs = jnp.stack(cols, axis=1).astype(jnp.int32)   # [B, 4]

    neg_idxs = sample_negatives(nkey, params)

    loss = compute_loss(params, batch_idxs, neg_idxs)
    jax.block_until_ready(loss)
    assert jnp.isfinite(loss)
    print("KERNEL_OK")
</pallas_src>

<mosaic_0001>
module attributes {stable_mosaic.version = 11 : i64} {
  func.func @_fused_kg_kernel(%arg0: i32, %arg1: memref<1x8x32xf32, #tpu.memory_space<vmem>>, %arg2: memref<1x8x32xf32, #tpu.memory_space<vmem>>, %arg3: memref<1x32x128xf32, #tpu.memory_space<vmem>>, %arg4: memref<1x1x32xf32, #tpu.memory_space<vmem>>, %arg5: memref<1x8x2xf32, #tpu.memory_space<vmem>>, %arg6: memref<1x1x1xf32, #tpu.memory_space<vmem>>, %arg7: memref<1x1x1xf32, #tpu.memory_space<vmem>>) attributes {dimension_semantics = [#tpu.dimension_semantics<parallel>], iteration_bounds = array<i64: 3>, scalar_prefetch = 0 : i64, scratch_operands = 0 : i64, tpu.core_type = #tpu.core_type<tc>, window_params = [{transform_indices = @transform_0, window_bounds = array<i64: 1, 8, 32>}, {transform_indices = @transform_1, window_bounds = array<i64: 1, 8, 32>}, {transform_indices = @transform_2, window_bounds = array<i64: 1, 32, 128>}, {transform_indices = @transform_3, window_bounds = array<i64: 1, 1, 32>}, {transform_indices = @transform_4, window_bounds = array<i64: 1, 8, 2>}, {transform_indices = @transform_5, window_bounds = array<i64: 1, 1, 1>}, {transform_indices = @transform_6, window_bounds = array<i64: 1, 1, 1>}]} {
    %c0 = arith.constant 0 : index
    %c0_0 = arith.constant 0 : index
    %c0_1 = arith.constant 0 : index
    %0 = vector.load %arg1[%c0, %c0_0, %c0_1] : memref<1x8x32xf32, #tpu.memory_space<vmem>>, vector<1x8x32xf32>
    %1 = vector.shape_cast %0 : vector<1x8x32xf32> to vector<8x32xf32>
    %c0_2 = arith.constant 0 : index
    %c0_3 = arith.constant 0 : index
    %c0_4 = arith.constant 0 : index
    %2 = vector.load %arg2[%c0_2, %c0_3, %c0_4] : memref<1x8x32xf32, #tpu.memory_space<vmem>>, vector<1x8x32xf32>
    %3 = vector.shape_cast %2 : vector<1x8x32xf32> to vector<8x32xf32>
    %c0_5 = arith.constant 0 : index
    %c0_6 = arith.constant 0 : index
    %c0_7 = arith.constant 0 : index
    %4 = vector.load %arg3[%c0_5, %c0_6, %c0_7] : memref<1x32x128xf32, #tpu.memory_space<vmem>>, vector<1x32x128xf32>
    %5 = vector.shape_cast %4 : vector<1x32x128xf32> to vector<32x128xf32>
    %c0_8 = arith.constant 0 : index
    %c0_9 = arith.constant 0 : index
    %c0_10 = arith.constant 0 : index
    %6 = vector.load %arg4[%c0_8, %c0_9, %c0_10] : memref<1x1x32xf32, #tpu.memory_space<vmem>>, vector<1x1x32xf32>
    %7 = vector.shape_cast %6 : vector<1x1x32xf32> to vector<1x32xf32>
    %c0_11 = arith.constant 0 : index
    %c0_12 = arith.constant 0 : index
    %c0_13 = arith.constant 0 : index
    %8 = vector.load %arg5[%c0_11, %c0_12, %c0_13] : memref<1x8x2xf32, #tpu.memory_space<vmem>>, vector<1x8x2xf32>
    %9 = vector.shape_cast %8 : vector<1x8x2xf32> to vector<8x2xf32>
    %10 = vector.extract_strided_slice %9 {offsets = [0, 0], sizes = [8, 1], strides = [1, 1]} : vector<8x2xf32> to vector<8x1xf32>
    %11 = vector.extract_strided_slice %9 {offsets = [0, 1], sizes = [8, 1], strides = [1, 1]} : vector<8x2xf32> to vector<8x1xf32>
    %12 = vector.broadcast %7 : vector<1x32xf32> to vector<8x32xf32>
    %13 = arith.addf %1, %12 : vector<8x32xf32>
    %14 = arith.mulf %13, %3 : vector<8x32xf32>
    %cst = arith.constant dense<0.000000e+00> : vector<8xf32>
    %15 = vector.multi_reduction <add>, %14, %cst [1] : vector<8x32xf32> to vector<8xf32>
    %16 = vector.shape_cast %15 : vector<8xf32> to vector<8x1xf32>
    %17 = arith.addf %16, %10 : vector<8x1xf32>
    %cst_14 = arith.constant 0.000000e+00 : f32
    %18 = vector.broadcast %cst_14 : f32 to vector<8x1xf32>
    %19 = arith.subf %18, %17 : vector<8x1xf32>
    %cst_15 = arith.constant 0.000000e+00 : f32
    %20 = vector.broadcast %cst_15 : f32 to vector<8x1xf32>
    %21 = arith.maximumf %19, %20 : vector<8x1xf32>
    %22 = math.absf %19 : vector<8x1xf32>
    %cst_16 = arith.constant 0.000000e+00 : f32
    %23 = vector.broadcast %cst_16 : f32 to vector<8x1xf32>
    %24 = arith.subf %23, %22 : vector<8x1xf32>
    %25 = math.exp %24 : vector<8x1xf32>
    %cst_17 = arith.constant 1.000000e+00 : f32
    %26 = vector.broadcast %cst_17 : f32 to vector<8x1xf32>
    %27 = arith.addf %26, %25 : vector<8x1xf32>
    %28 = math.log %27 : vector<8x1xf32>
    %29 = arith.addf %21, %28 : vector<8x1xf32>
    %cst_18 = arith.constant dense<0.000000e+00> : vector<8x128xf32>
    %30 = tpu.matmul %13, %5, %cst_18 {dimension_numbers = #tpu.dot_dimension_numbers<[1], [0], [0], [1], [0, 0, 1, 1], [], []>} : vector<8x32xf32>, vector<32x128xf32>, vector<8x128xf32> -> vector<8x128xf32>
    %31 = vector.broadcast %10 : vector<8x1xf32> to vector<8x128xf32>
    %32 = arith.addf %30, %31 : vector<8x128xf32>
    %33 = tpu.iota {dimensions = array<i32: 1>} : vector<8x128xi32>
    %c64_i32 = arith.constant 64 : i32
    %34 = vector.broadcast %c64_i32 : i32 to vector<8x128xi32>
    %35 = arith.cmpi slt, %33, %34 : vector<8x128xi32>
    %36 = arith.extui %35 : vector<8x128xi1> to vector<8x128xi32>
    %37 = arith.sitofp %36 : vector<8x128xi32> to vector<8x128xf32>
    %cst_19 = arith.constant 0.000000e+00 : f32
    %38 = vector.broadcast %cst_19 : f32 to vector<8x128xf32>
    %39 = arith.maximumf %32, %38 : vector<8x128xf32>
    %40 = math.absf %32 : vector<8x128xf32>
    %cst_20 = arith.constant 0.000000e+00 : f32
    %41 = vector.broadcast %cst_20 : f32 to vector<8x128xf32>
    %42 = arith.subf %41, %40 : vector<8x128xf32>
    %43 = math.exp %42 : vector<8x128xf32>
    %cst_21 = arith.constant 1.000000e+00 : f32
    %44 = vector.broadcast %cst_21 : f32 to vector<8x128xf32>
    %45 = arith.addf %44, %43 : vector<8x128xf32>
    %46 = math.log %45 : vector<8x128xf32>
    %47 = arith.addf %39, %46 : vector<8x128xf32>
    %48 = arith.mulf %47, %37 : vector<8x128xf32>
    %cst_22 = arith.constant dense<0.000000e+00> : vector<8xf32>
    %49 = vector.multi_reduction <add>, %48, %cst_22 [1] : vector<8x128xf32> to vector<8xf32>
    %50 = vector.shape_cast %49 : vector<8xf32> to vector<8x1xf32>
    %51 = arith.addf %29, %50 : vector<8x1xf32>
    %52 = arith.mulf %51, %11 : vector<8x1xf32>
    %cst_23 = arith.constant dense<0.000000e+00> : vector<1xf32>
    %53 = vector.multi_reduction <add>, %52, %cst_23 [0] : vector<8x1xf32> to vector<1xf32>
    %54 = vector.shape_cast %53 : vector<1xf32> to vector<1x1xf32>
    %cst_24 = arith.constant dense<0.000000e+00> : vector<1xf32>
    %55 = vector.multi_reduction <add>, %11, %cst_24 [0] : vector<8x1xf32> to vector<1xf32>
    %56 = vector.shape_cast %55 : vector<1xf32> to vector<1x1xf32>
    %cst_25 = arith.constant 1.000000e+00 : f32
    %57 = vector.broadcast %cst_25 : f32 to vector<1x1xf32>
    %58 = arith.maximumf %56, %57 : vector<1x1xf32>
    %59 = arith.divf %54, %58 : vector<1x1xf32>
    %c0_26 = arith.constant 0 : index
    %c0_27 = arith.constant 0 : index
    %c0_28 = arith.constant 0 : index
    %60 = vector.load %arg6[%c0_26, %c0_27, %c0_28] : memref<1x1x1xf32, #tpu.memory_space<vmem>>, vector<1x1x1xf32>
    %61 = vector.shape_cast %60 : vector<1x1x1xf32> to vector<1x1xf32>
    %62 = vector.shape_cast %59 : vector<1x1xf32> to vector<1x1x1xf32>
    tpu.vector_store %arg6[%c0_26, %c0_27, %c0_28], %62 {strides = array<i32>} : memref<1x1x1xf32, #tpu.memory_space<vmem>>, vector<1x1x1xf32>,
    %63 = arith.mulf %1, %1 : vector<8x32xf32>
    %64 = vector.broadcast %11 : vector<8x1xf32> to vector<8x32xf32>
    %65 = arith.mulf %63, %64 : vector<8x32xf32>
    %cst_29 = arith.constant dense<0.000000e+00> : vector<8xf32>
    %66 = vector.multi_reduction <add>, %65, %cst_29 [1] : vector<8x32xf32> to vector<8xf32>
    %67 = vector.shape_cast %66 : vector<8xf32> to vector<8x1xf32>
    %cst_30 = arith.constant dense<0.000000e+00> : vector<1xf32>
    %68 = vector.multi_reduction <add>, %67, %cst_30 [0] : vector<8x1xf32> to vector<1xf32>
    %69 = vector.shape_cast %68 : vector<1xf32> to vector<1x1xf32>
    %70 = math.sqrt %69 : vector<1x1xf32>
    %71 = arith.mulf %3, %3 : vector<8x32xf32>
    %72 = vector.broadcast %11 : vector<8x1xf32> to vector<8x32xf32>
    %73 = arith.mulf %71, %72 : vector<8x32xf32>
    %cst_31 = arith.constant dense<0.000000e+00> : vector<8xf32>
    %74 = vector.multi_reduction <add>, %73, %cst_31 [1] : vector<8x32xf32> to vector<8xf32>
    %75 = vector.shape_cast %74 : vector<8xf32> to vector<8x1xf32>
    %cst_32 = arith.constant dense<0.000000e+00> : vector<1xf32>
    %76 = vector.multi_reduction <add>, %75, %cst_32 [0] : vector<8x1xf32> to vector<1xf32>
    %77 = vector.shape_cast %76 : vector<1xf32> to vector<1x1xf32>
    %78 = math.sqrt %77 : vector<1x1xf32>
    %79 = arith.addf %70, %78 : vector<1x1xf32>
    %80 = arith.mulf %5, %5 : vector<32x128xf32>
    %cst_33 = arith.constant dense<0.000000e+00> : vector<32xf32>
    %81 = vector.multi_reduction <add>, %80, %cst_33 [1] : vector<32x128xf32> to vector<32xf32>
    %82 = vector.shape_cast %81 : vector<32xf32> to vector<32x1xf32>
    %cst_34 = arith.constant dense<0.000000e+00> : vector<1xf32>
    %83 = vector.multi_reduction <add>, %82, %cst_34 [0] : vector<32x1xf32> to vector<1xf32>
    %84 = vector.shape_cast %83 : vector<1xf32> to vector<1x1xf32>
    %85 = math.sqrt %84 : vector<1x1xf32>
    %86 = arith.addf %79, %85 : vector<1x1xf32>
    %c0_35 = arith.constant 0 : index
    %c0_36 = arith.constant 0 : index
    %c0_37 = arith.constant 0 : index
    %87 = vector.load %arg7[%c0_35, %c0_36, %c0_37] : memref<1x1x1xf32, #tpu.memory_space<vmem>>, vector<1x1x1xf32>
    %88 = vector.shape_cast %87 : vector<1x1x1xf32> to vector<1x1xf32>
    %89 = vector.shape_cast %86 : vector<1x1xf32> to vector<1x1x1xf32>
    tpu.vector_store %arg7[%c0_35, %c0_36, %c0_37], %89 {strides = array<i32>} : memref<1x1x1xf32, #tpu.memory_space<vmem>>, vector<1x1x1xf32>,
    return
  }
  func.func @transform_0(%arg0: i32) -> (i32, i32, i32) {
    %c0_i32 = arith.constant 0 : i32
    %c0_i32_0 = arith.constant 0 : i32
    %c0_i32_1 = arith.constant 0 : i32
    return %arg0, %c0_i32, %c0_i32_0 : i32, i32, i32
  }
  func.func @transform_1(%arg0: i32) -> (i32, i32, i32) {
    %c0_i32 = arith.constant 0 : i32
    %c0_i32_0 = arith.constant 0 : i32
    %c0_i32_1 = arith.constant 0 : i32
    return %arg0, %c0_i32, %c0_i32_0 : i32, i32, i32
  }
  func.func @transform_2(%arg0: i32) -> (i32, i32, i32) {
    %c0_i32 = arith.constant 0 : i32
    %c0_i32_0 = arith.constant 0 : i32
    %c0_i32_1 = arith.constant 0 : i32
    return %arg0, %c0_i32, %c0_i32_0 : i32, i32, i32
  }
  func.func @transform_3(%arg0: i32) -> (i32, i32, i32) {
    %c0_i32 = arith.constant 0 : i32
    %c0_i32_0 = arith.constant 0 : i32
    %c0_i32_1 = arith.constant 0 : i32
    return %arg0, %c0_i32, %c0_i32_0 : i32, i32, i32
  }
  func.func @transform_4(%arg0: i32) -> (i32, i32, i32) {
    %c0_i32 = arith.constant 0 : i32
    %c0_i32_0 = arith.constant 0 : i32
    %c0_i32_1 = arith.constant 0 : i32
    return %arg0, %c0_i32, %c0_i32_0 : i32, i32, i32
  }
  func.func @transform_5(%arg0: i32) -> (i32, i32, i32) {
    %c0_i32 = arith.constant 0 : i32
    %c0_i32_0 = arith.constant 0 : i32
    %c0_i32_1 = arith.constant 0 : i32
    return %arg0, %c0_i32, %c0_i32_0 : i32, i32, i32
  }
  func.func @transform_6(%arg0: i32) -> (i32, i32, i32) {
    %c0_i32 = arith.constant 0 : i32
    %c0_i32_0 = arith.constant 0 : i32
    %c0_i32_1 = arith.constant 0 : i32
    return %arg0, %c0_i32, %c0_i32_0 : i32, i32, i32
  }
}

</mosaic_0001>

<llo_original>
// kernel: tpu_custom_call.1
$region0: #{tpu_custom_call.1}
  #allocation0 [shape = 'u32[]', space=smem, size = 0x4, offset = 0x4, fixed_abs, tag = 'smem constant byte address 0x4 - core index']
  #allocation1 [shape = 'u32[144,128]{1,0:T(1,128)}', space=vmem, size = 0x12000, scoped, tag = 'internal scratch']
  %s0 = inlined_call_operand.vmem [shape: f32[3,8,32], index: 0, kind: input, shape index: {}]
  %s1 = inlined_call_operand.hbm [shape: f32[3,8,32], index: 1, kind: input, shape index: {}]
  %s2 = inlined_call_operand.hbm [shape: f32[3,32,128], index: 2, kind: input, shape index: {}]
  %s3 = inlined_call_operand.vmem [shape: f32[3,1,32], index: 3, kind: input, shape index: {}]
  %s4 = inlined_call_operand.vmem [shape: f32[3,8,2], index: 4, kind: input, shape index: {}]
  %s5 = inlined_call_operand.vmem [shape: f32[3,1,1], index: 5, kind: output, shape index: {0}]
  %s6 = inlined_call_operand.vmem [shape: f32[3,1,1], index: 6, kind: output, shape index: {1}]
  %7 = xla_tuple %s5, %s6
  %s8 = sld [smem:[#allocation0]]
  $region69: #{tpu_custom_call.1} parent=0
    _
  %s10 = ssub.s32 1, %s8
  %s11 = scalar_select 0, %s10, %s8
  $region1: #{tpu_custom_call.1} parent=0
    #allocation2 [shape = 'u8[8192]{0}', space=vmem, size = 0x2000, scoped, tag = 'input window, operand 1']
    #allocation3 [shape = 's32[2]{0}', space=sflag, size = 0x8, scoped, tag = 'scoped memory for tpu_custom_call.1']
    #allocation4 [shape = 'u8[32768]{0}', space=vmem, size = 0x8000, scoped, tag = 'input window, operand 2']
    #allocation5 [shape = 's32[2]{0}', space=sflag, size = 0x8, scoped, tag = 'scoped memory for tpu_custom_call.1']
    %12 = vsyncpa [#allocation3], 0
    %s13 = scalar_lea.sflag [#allocation3], 1
    %14 = vsyncpa %s13, 0
    %15 = vsyncpa [#allocation5], 0
    %s16 = scalar_lea.sflag [#allocation5], 1
    %17 = vsyncpa %s16, 0
    loop: start=0, step=1, limit=5
    $region2: #{tpu_custom_call.1} parent=1 // loop_pre_header
      _
    $region3: #{tpu_custom_call.1} parent=1 // loop_header
      %s19 = sphi 0, %s23
      %p20 = scmp.ge.s32.totalorder %s19, 5
      %s29 = sphi 0, %s31
      %s32 = sphi 0, %s29
      %s33 = sphi 0, %s32
      %s49 = sphi 0, %s33
      %s55 = sphi 0, %s57
      %s58 = sphi 0, %s55
      %s59 = sphi 0, %s58
      %s75 = sphi 0, %s59
      %s81 = sphi 0, %s83
      %s84 = sphi 0, %s81
      %s85 = sphi 0, %s84
      %s101 = sphi 0, %s85
      %s107 = sphi 0, %s109
      %s110 = sphi 0, %s107
      %s111 = sphi 0, %s110
      %s127 = sphi 0, %s111
      %s133 = sphi 0, %s135
      %s136 = sphi 0, %s133
      %s137 = sphi 0, %s136
      %s153 = sphi 0, %s137
      %s159 = sphi 0, %s161
      %s162 = sphi 0, %s159
      %s163 = sphi 0, %s162
      %s179 = sphi 0, %s163
      %s185 = sphi 0, %s187
      %s188 = sphi 0, %s185
      %s189 = sphi 0, %s188
      %s205 = sphi 0, %s189
    $region4: #{tpu_custom_call.1} parent=1 // loop_header_branch
      %22 = sbr.rel (%p20) target = $region8
    $region5: #{tpu_custom_call.1} parent=1 // loop_body
      %s24 = ssub.s32 %s19, 1
      %s25 = ssub.s32 %s19, 2
      %s26 = sadd.s32 %s19, 1
      %s27 = ssub.s32 %s19, %s26
      %p28 = scmp.eq.s32.totalorder %s27, 0
      %s30 = sadd.s32 %s29, 1
      %s31 = scalar_select %p28, %s29, %s30
      %p34 = pneg %p28
      %p35 = scmp.eq.s32.totalorder %s19, 2
      %p36 = por %p34, %p35
      %p37 = scmp.ne.s32.totalorder %s29, %s32
      %p38 = scmp.eq.s32.totalorder %s19, 0
      %p39 = por %p37, %p38
      %p40 = scmp.ne.s32.totalorder %s29, %s32
      %p41 = scmp.eq.s32.totalorder %s24, 2
      %p42 = por %p40, %p41
      %p43 = scmp.ne.s32.totalorder %s32, %s33
      %p44 = scmp.eq.s32.totalorder %s24, 0
      %p45 = por %p43, %p44
      %p46 = scmp.ne.s32.totalorder %s32, %s33
      %p47 = scmp.eq.s32.totalorder %s25, 2
      %p48 = por %p46, %p47
      %p50 = scmp.ne.s32.totalorder %s33, %s49
      %p51 = scmp.eq.s32.totalorder %s25, 0
      %p52 = por %p50, %p51
      %s53 = ssub.s32 %s19, %s26
      %p54 = scmp.eq.s32.totalorder %s53, 0
      %s56 = sadd.s32 %s55, 1
      %s57 = scalar_select %p54, %s55, %s56
      %p60 = pneg %p54
      %p61 = scmp.eq.s32.totalorder %s19, 2
      %p62 = por %p60, %p61
      %p63 = scmp.ne.s32.totalorder %s55, %s58
      %p64 = scmp.eq.s32.totalorder %s19, 0
      %p65 = por %p63, %p64
      %p66 = scmp.ne.s32.totalorder %s55, %s58
      %p67 = scmp.eq.s32.totalorder %s24, 2
      %p68 = por %p66, %p67
      %p69 = scmp.ne.s32.totalorder %s58, %s59
      %p70 = scmp.eq.s32.totalorder %s24, 0
      %p71 = por %p69, %p70
      %p72 = scmp.ne.s32.totalorder %s58, %s59
      %p73 = scmp.eq.s32.totalorder %s25, 2
      %p74 = por %p72, %p73
      %p76 = scmp.ne.s32.totalorder %s59, %s75
      %p77 = scmp.eq.s32.totalorder %s25, 0
      %p78 = por %p76, %p77
      %s79 = ssub.s32 %s19, %s26
      %p80 = scmp.eq.s32.totalorder %s79, 0
      %s82 = sadd.s32 %s81, 1
      %s83 = scalar_select %p80, %s81, %s82
      %p86 = pneg %p80
      %p87 = scmp.eq.s32.totalorder %s19, 2
      %p88 = por %p86, %p87
      %p89 = scmp.ne.s32.totalorder %s81, %s84
      %p90 = scmp.eq.s32.totalorder %s19, 0
      %p91 = por %p89, %p90
      %p92 = scmp.ne.s32.totalorder %s81, %s84
      %p93 = scmp.eq.s32.totalorder %s24, 2
      %p94 = por %p92, %p93
      %p95 = scmp.ne.s32.totalorder %s84, %s85
      %p96 = scmp.eq.s32.totalorder %s24, 0
      %p97 = por %p95, %p96
      %p98 = scmp.ne.s32.totalorder %s84, %s85
      %p99 = scmp.eq.s32.totalorder %s25, 2
      %p100 = por %p98, %p99
      %p102 = scmp.ne.s32.totalorder %s85, %s101
      %p103 = scmp.eq.s32.totalorder %s25, 0
      %p104 = por %p102, %p103
      %s105 = ssub.s32 %s19, %s26
      %p106 = scmp.eq.s32.totalorder %s105, 0
      %s108 = sadd.s32 %s107, 1
      %s109 = scalar_select %p106, %s107, %s108
      %p112 = pneg %p106
      %p113 = scmp.eq.s32.totalorder %s19, 2
      %p114 = por %p112, %p113
      %p115 = scmp.ne.s32.totalorder %s107, %s110
      %p116 = scmp.eq.s32.totalorder %s19, 0
      %p117 = por %p115, %p116
      %p118 = scmp.ne.s32.totalorder %s107, %s110
      %p119 = scmp.eq.s32.totalorder %s24, 2
      %p120 = por %p118, %p119
      %p121 = scmp.ne.s32.totalorder %s110, %s111
      %p122 = scmp.eq.s32.totalorder %s24, 0
      %p123 = por %p121, %p122
      %p124 = scmp.ne.s32.totalorder %s110, %s111
      %p125 = scmp.eq.s32.totalorder %s25, 2
      %p126 = por %p124, %p125
      %p128 = scmp.ne.s32.totalorder %s111, %s127
      %p129 = scmp.eq.s32.totalorder %s25, 0
      %p130 = por %p128, %p129
      %s131 = ssub.s32 %s19, %s26
      %p132 = scmp.eq.s32.totalorder %s131, 0
      %s134 = sadd.s32 %s133, 1
      %s135 = scalar_select %p132, %s133, %s134
      %p138 = pneg %p132
      %p139 = scmp.eq.s32.totalorder %s19, 2
      %p140 = por %p138, %p139
      %p141 = scmp.ne.s32.totalorder %s133, %s136
      %p142 = scmp.eq.s32.totalorder %s19, 0
      %p143 = por %p141, %p142
      %p144 = scmp.ne.s32.totalorder %s133, %s136
      %p145 = scmp.eq.s32.totalorder %s24, 2
      %p146 = por %p144, %p145
      %p147 = scmp.ne.s32.totalorder %s136, %s137
      %p148 = scmp.eq.s32.totalorder %s24, 0
      %p149 = por %p147, %p148
      %p150 = scmp.ne.s32.totalorder %s136, %s137
      %p151 = scmp.eq.s32.totalorder %s25, 2
      %p152 = por %p150, %p151
      %p154 = scmp.ne.s32.totalorder %s137, %s153
      %p155 = scmp.eq.s32.totalorder %s25, 0
      %p156 = por %p154, %p155
      %s157 = ssub.s32 %s19, %s26
      %p158 = scmp.eq.s32.totalorder %s157, 0
      %s160 = sadd.s32 %s159, 1
      %s161 = scalar_select %p158, %s159, %s160
      %p164 = pneg %p158
      %p165 = scmp.eq.s32.totalorder %s19, 2
      %p166 = por %p164, %p165
      %p167 = scmp.ne.s32.totalorder %s159, %s162
      %p168 = scmp.eq.s32.totalorder %s19, 0
      %p169 = por %p167, %p168
      %p170 = scmp.ne.s32.totalorder %s159, %s162
      %p171 = scmp.eq.s32.totalorder %s24, 2
      %p172 = por %p170, %p171
      %p173 = scmp.ne.s32.totalorder %s162, %s163
      %p174 = scmp.eq.s32.totalorder %s24, 0
      %p175 = por %p173, %p174
      %p176 = scmp.ne.s32.totalorder %s162, %s163
      %p177 = scmp.eq.s32.totalorder %s25, 2
      %p178 = por %p176, %p177
      %p180 = scmp.ne.s32.totalorder %s163, %s179
      %p181 = scmp.eq.s32.totalorder %s25, 0
      %p182 = por %p180, %p181
      %s183 = ssub.s32 %s19, %s26
      %p184 = scmp.eq.s32.totalorder %s183, 0
      %s186 = sadd.s32 %s185, 1
      %s187 = scalar_select %p184, %s185, %s186
      %p190 = pneg %p184
      %p191 = scmp.eq.s32.totalorder %s19, 2
      %p192 = por %p190, %p191
      %p193 = scmp.ne.s32.totalorder %s185, %s188
      %p194 = scmp.eq.s32.totalorder %s19, 0
      %p195 = por %p193, %p194
      %p196 = scmp.ne.s32.totalorder %s185, %s188
      %p197 = scmp.eq.s32.totalorder %s24, 2
      %p198 = por %p196, %p197
      %p199 = scmp.ne.s32.totalorder %s188, %s189
      %p200 = scmp.eq.s32.totalorder %s24, 0
      %p201 = por %p199, %p200
      %p202 = scmp.ne.s32.totalorder %s188, %s189
      %p203 = scmp.eq.s32.totalorder %s25, 2
      %p204 = por %p202, %p203
      %p206 = scmp.ne.s32.totalorder %s189, %s205
      %p207 = scmp.eq.s32.totalorder %s25, 0
      %p208 = por %p206, %p207
      %p209 = scmp.le.s32.totalorder 1, %s19
      %p210 = scmp.lt.s32.totalorder %s19, 4
      %p211 = pnand %p209, %p210
      %p212 = pneg %p211
      // Predicated region
      $region9: #{tpu_custom_call.1} parent=5 // pred_check
        _
      $region10: #{tpu_custom_call.1} parent=5 // pred_check_branch
        %214 = sbr.rel (%p211) target = $region12
      $region11: #{tpu_custom_call.1} parent=5 // pred_region
        %s215 = ssub.s32 %s19, 1
      $region12: #{tpu_custom_call.1} parent=5 // pred_fallthru
        _
      %p216 = scmp.lt.s32.totalorder %s19, 3
      // Predicated region
      $region13: #{tpu_custom_call.1} parent=5 // pred_check
        %p217 = pneg %p216
      $region14: #{tpu_custom_call.1} parent=5 // pred_check_branch
        %219 = sbr.rel (%p217) target = $region16
      $region15: #{tpu_custom_call.1} parent=5 // pred_region
        // Predicated region
        $region17: #{tpu_custom_call.1} parent=15 // pred_check
          %p220 = pneg %p39
        $region18: #{tpu_custom_call.1} parent=15 // pred_check_branch
          %222 = sbr.rel (%p220) target = $region20
        $region19: #{tpu_custom_call.1} parent=15 // pred_region
          %p223 = scmp.lt.s32.totalorder %s19, 2
          %s224 = scalar_select %p223, %s19, 2
          %s225 = smul.addr %s224, 8
          %s226 = scalar_lea.vmem %s0, %s225
        $region20: #{tpu_custom_call.1} parent=15 // pred_fallthru
          _
        // Predicated region
        $region21: #{tpu_custom_call.1} parent=15 // pred_check
          %p227 = pneg %p65
        $region22: #{tpu_custom_call.1} parent=15 // pred_check_branch
          %229 = sbr.rel (%p227) target = $region24
        $region23: #{tpu_custom_call.1} parent=15 // pred_region
          %s230 = sand.u32 %s55, 1
          %s231 = scalar_lea.sflag [#allocation3], %s230
          %s232 = sand.u32 %s55, 1
          %s233 = smul.addr %s232, 8
          %s234 = scalar_lea.vmem [#allocation2], %s233
          %s236 = ssub.s32 128, 128
          %237 = vsyncadd %s231, %s236
          %s238 = smul.addr %s19, 128
          %s239 = scalar_lea.hbm %s1, %s238
          %s241 = sshll.u32 %s234, 4
          %s242 = int_to_ptr.vmem [resolvable:$true] %s241
          %244 = dma.hbm_to_vmem [thread:$0]  %s239, 128, %s242, %s231
        $region24: #{tpu_custom_call.1} parent=15 // pred_fallthru
          _
        // Predicated region
        $region25: #{tpu_custom_call.1} parent=15 // pred_check
          %p245 = pneg %p91
        $region26: #{tpu_custom_call.1} parent=15 // pred_check_branch
          %247 = sbr.rel (%p245) target = $region28
        $region27: #{tpu_custom_call.1} parent=15 // pred_region
          %s248 = sand.u32 %s81, 1
          %s249 = scalar_lea.sflag [#allocation5], %s248
          %s250 = sand.u32 %s81, 1
          %s251 = smul.addr %s250, 32
          %s252 = scalar_lea.vmem [#allocation4], %s251
          %s254 = ssub.s32 512, 512
          %255 = vsyncadd %s249, %s254
          %s256 = smul.addr %s19, 4
          %s257 = smul.addr %s256, 128
          %s258 = scalar_lea.hbm %s2, %s257
          %s259 = sshll.u32 %s252, 4
          %s260 = int_to_ptr.vmem [resolvable:$true] %s259
          %265 = dma.hbm_to_vmem [thread:$0]  %s258, 512, %s260, %s249, 128, 128, 8
        $region28: #{tpu_custom_call.1} parent=15 // pred_fallthru
          _
        // Predicated region
        $region29: #{tpu_custom_call.1} parent=15 // pred_check
          %p266 = pneg %p117
        $region30: #{tpu_custom_call.1} parent=15 // pred_check_branch
          %268 = sbr.rel (%p266) target = $region32
        $region31: #{tpu_custom_call.1} parent=15 // pred_region
          %p269 = scmp.lt.s32.totalorder %s19, 2
          %s270 = scalar_select %p269, %s19, 2
          %s271 = scalar_lea.vmem %s3, %s270
        $region32: #{tpu_custom_call.1} parent=15 // pred_fallthru
          _
        // Predicated region
        $region33: #{tpu_custom_call.1} parent=15 // pred_check
          %p272 = pneg %p143
        $region34: #{tpu_custom_call.1} parent=15 // pred_check_branch
          %274 = sbr.rel (%p272) target = $region36
        $region35: #{tpu_custom_call.1} parent=15 // pred_region
          %p275 = scmp.lt.s32.totalorder %s19, 2
          %s276 = scalar_select %p275, %s19, 2
          %s277 = smul.addr %s276, 8
          %s278 = scalar_lea.vmem %s4, %s277
        $region36: #{tpu_custom_call.1} parent=15 // pred_fallthru
          _
      $region16: #{tpu_custom_call.1} parent=5 // pred_fallthru
        _
      %p279 = scmp.le.s32.totalorder 1, %s19
      %p280 = scmp.lt.s32.totalorder %s19, 4
      %p281 = pnand %p279, %p280
      %p282 = pneg %p281
      // Predicated region
      $region37: #{tpu_custom_call.1} parent=5 // pred_check
        _
      $region38: #{tpu_custom_call.1} parent=5 // pred_check_branch
        %284 = sbr.rel (%p281) target = $region40
      $region39: #{tpu_custom_call.1} parent=5 // pred_region
        %s285 = ssub.s32 %s19, 1
        %s286 = sand.u32 %s58, 1
        %s287 = scalar_lea.sflag [#allocation3], %s286
        %s288 = sand.u32 %s58, 1
        %s289 = smul.addr %s288, 8
        %s290 = scalar_lea.vmem [#allocation2], %s289
        // Predicated region
        $region41: #{tpu_custom_call.1} parent=39 // pred_check
          %p291 = pneg %p71
        $region42: #{tpu_custom_call.1} parent=39 // pred_check_branch
          %293 = sbr.rel (%p291) target = $region44
        $region43: #{tpu_custom_call.1} parent=39 // pred_region
          %294 = dma.done %s287, 128
        $region44: #{tpu_custom_call.1} parent=39 // pred_fallthru
          _
        %s295 = sand.u32 %s84, 1
        %s296 = scalar_lea.sflag [#allocation5], %s295
        %s297 = sand.u32 %s84, 1
        %s298 = smul.addr %s297, 32
        %s299 = scalar_lea.vmem [#allocation4], %s298
        // Predicated region
        $region45: #{tpu_custom_call.1} parent=39 // pred_check
          %p300 = pneg %p97
        $region46: #{tpu_custom_call.1} parent=39 // pred_check_branch
          %302 = sbr.rel (%p300) target = $region48
        $region47: #{tpu_custom_call.1} parent=39 // pred_region
          %303 = dma.done %s296, 512
        $region48: #{tpu_custom_call.1} parent=39 // pred_fallthru
          _
        %p304 = scmp.lt.s32.totalorder %s24, 2
        %s305 = scalar_select %p304, %s24, 2
        %s306 = smul.addr %s305, 8
        %s307 = scalar_lea.vmem %s0, %s306
        %p308 = pneg %p45
        %p309 = pneg %p42
        %s310 = sand.u32 %s58, 1
        %s311 = scalar_lea.sflag [#allocation3], %s310
        %s312 = sand.u32 %s58, 1
        %s313 = smul.addr %s312, 8
        %s314 = scalar_lea.vmem [#allocation2], %s313
        %p315 = pneg %p71
        %p316 = pneg %p68
        %s317 = sand.u32 %s84, 1
        %s318 = scalar_lea.sflag [#allocation5], %s317
        %s319 = sand.u32 %s84, 1
        %s320 = smul.addr %s319, 32
        %s321 = scalar_lea.vmem [#allocation4], %s320
        %p322 = pneg %p97
        %p323 = pneg %p94
        %p324 = scmp.lt.s32.totalorder %s24, 2
        %s325 = scalar_select %p324, %s24, 2
        %s326 = scalar_lea.vmem %s3, %s325
        %p327 = pneg %p123
        %p328 = pneg %p120
        %p329 = scmp.lt.s32.totalorder %s24, 2
        %s330 = scalar_select %p329, %s24, 2
        %s331 = smul.addr %s330, 8
        %s332 = scalar_lea.vmem %s4, %s331
        %p333 = pneg %p149
        %p334 = pneg %p146
        %p335 = pneg %p175
        %p336 = pneg %p172
        %p337 = scmp.lt.s32.totalorder %s24, 2
        %s338 = scalar_select %p337, %s24, 2
        %s339 = scalar_lea.vmem %s5, %s338
        %p340 = pneg %p201
        %p341 = pneg %p198
        %p342 = scmp.lt.s32.totalorder %s24, 2
        %s343 = scalar_select %p342, %s24, 2
        %s344 = scalar_lea.vmem %s6, %s343
        %p345 = scmp.lt.s32.totalorder %s24, 2
        %s346 = scalar_select %p345, %s24, 2
        %s347 = smul.addr %s346, 8
        %s348 = scalar_lea.vmem %s0, %s347
        %p349 = scmp.lt.s32.totalorder %s24, 2
        %s350 = scalar_select %p349, %s24, 2
        %s351 = scalar_lea.vmem %s3, %s350
        %p352 = scmp.lt.s32.totalorder %s24, 2
        %s353 = scalar_select %p352, %s24, 2
        %s354 = smul.addr %s353, 8
        %s355 = scalar_lea.vmem %s4, %s354
        %p356 = scmp.lt.s32.totalorder %s24, 2
        %s357 = scalar_select %p356, %s24, 2
        %s358 = scalar_lea.vmem %s5, %s357
        %p359 = scmp.lt.s32.totalorder %s24, 2
        %s360 = scalar_select %p359, %s24, 2
        %s361 = scalar_lea.vmem %s6, %s360
        %v362 = vld [vmem:[%s348] sm:$0xff]
        %v363 = vld [vmem:[%s290] sm:$0xff]
        %v364 = vld [vmem:[%s299] sm:$0xff]
        %v365 = vld [vmem:[%s299 + $0x8] sm:$0xff]
        %v366 = vld [vmem:[%s299 + $0x10] sm:$0xff]
        %v367 = vld [vmem:[%s299 + $0x18] sm:$0xff]
        %v368 = vld [vmem:[%s351] sm:$0x1]
        %v369 = vld [vmem:[%s355] sm:$0xff]
        %v371 = vlaneseq
        %v372 = vshrl.u32 %v371, 7
        %v373 = vsub.s32 0, %v372
        %v374 = vrot.slane %v368, %v373
        %v376 = vadd.f32 %v362, %v374
        %v377 = vmul.f32 %v376, %v363
        %vm378 = vcmask 261120
        %v379 = vsel %vm378, %v377, 0.0
        %380 = vadd.xlane.f32.xlu0 %v379
        %v381 = vpop.xlane.xlu0 %380
        %v382 = vadd.f32 %v381, %v369
        %v383 = vsub.f32 0.0, %v382
        %v384 = vmax.f32 %v383, 0.0
        %v385 = vand.u32 2147483647, %v383
        %v386 = vsub.f32 0.0, %v385
        %v387 = vmul.f32 %v386, 1.442695
        %v388 = vpow.pop %v387
        %v389 = vadd.f32 %v388, 1.0
        %v390 = vlog2.pop %v389
        %v391 = vmul.f32 %v390, 0.6931472
        %v392 = vadd.f32 %v384, %v391
        %394 = vset.pattern.permute.xlu0 0
        %395 = vperm.xlu0 %394, %v369
        %v396 = vpop.permute.xlu0 %395
        %v399 = vsel %vm378, %v376, 0
        %401 = vmatprep.subr.mxu0 0.0
        %402 = vmatpush1.msra.mxu0 %v364
        %403 = vmatprep.subr.mxu0 0.0
        %404 = vmatpush1.msra.mxu0 %v365
        %405 = vmatprep.subr.mxu0 0.0
        %406 = vmatpush1.msra.mxu0 %v366
        %407 = vmatprep.subr.mxu0 0.0
        %408 = vmatpush1.msra.mxu0 %v367
        %409 = vmatprep.subr.mxu0 0.0
        %410 = vmatpush1.msra.mxu0 0.0
        %411 = vmatprep.subr.mxu0 0.0
        %412 = vmatpush1.msra.mxu0 0.0
        %413 = vmatprep.subr.mxu0 0.0
        %414 = vmatpush1.msra.mxu0 0.0
        %415 = vmatprep.subr.mxu0 0.0
        %416 = vmatpush1.msra.mxu0 0.0
        %417 = vmatprep.subr.mxu0 0.0
        %418 = vmatpush1.msra.mxu0 0.0
        %419 = vmatprep.subr.mxu0 0.0
        %420 = vmatpush1.msra.mxu0 0.0
        %421 = vmatprep.subr.mxu0 0.0
        %422 = vmatpush1.msra.mxu0 0.0
        %423 = vmatprep.subr.mxu0 0.0
        %424 = vmatpush1.msra.mxu0 0.0
        %425 = vmatprep.subr.mxu0 0.0
        %426 = vmatpush1.msra.mxu0 0.0
        %427 = vmatprep.subr.mxu0 0.0
        %428 = vmatpush1.msra.mxu0 0.0
        %429 = vmatprep.subr.mxu0 0.0
        %430 = vmatpush1.msra.mxu0 0.0
        %431 = vmatprep.subr.mxu0 0.0
        %432 = vmatpush1.msra.mxu0 0.0
        %433 = vmatprep.subr.mxu0 0.0
        %434 = vmatpush1.msra.mxu0 0.0
        %435 = vmatprep.subr.mxu0 0.0
        %436 = vmatpush1.msra.mxu0 0.0
        %437 = vmatprep.subr.mxu0 0.0
        %438 = vmatpush1.msra.mxu0 0.0
        %439 = vmatprep.subr.mxu0 0.0
        %440 = vmatpush1.msra.mxu0 0.0
        %441 = vmatprep.subr.mxu0 0.0
        %442 = vmatpush1.msra.mxu0 0.0
        %443 = vmatprep.subr.mxu0 0.0
        %444 = vmatpush1.msra.mxu0 0.0
        %445 = vmatprep.subr.mxu0 0.0
        %446 = vmatpush1.msra.mxu0 0.0
        %447 = vmatprep.subr.mxu0 0.0
        %448 = vmatpush1.msra.mxu0 0.0
        %449 = vmatprep.subr.mxu0 0.0
        %450 = vmatpush1.msra.mxu0 0.0
        %451 = vmatprep.subr.mxu0 0.0
        %452 = vmatpush1.msra.mxu0 0.0
        %453 = vmatprep.subr.mxu0 0.0
        %454 = vmatpush1.msra.mxu0 0.0
        %455 = vmatprep.subr.mxu0 0.0
        %456 = vmatpush1.msra.mxu0 0.0
        %457 = vmatprep.subr.mxu0 0.0
        %458 = vmatpush1.msra.mxu0 0.0
        %459 = vmatprep.subr.mxu0 0.0
        %460 = vmatpush1.msra.mxu0 0.0
        %461 = vmatprep.subr.mxu0 0.0
        %462 = vmatpush1.msra.mxu0 0.0
        %463 = vmatprep.subr.mxu0 0.0
        %464 = vmatpush1.msra.mxu0 0.0
        %465 = vmatprep.mubr.f32.mxu0 0.0
        %466 = vmatmul.mubr.f32.gmra.mrb[0].mxu0 %v399
        %v467 = vpop.f32.mrb[0].mxu0
        %v468 = vadd.f32 %v396, %v467
        %v469 = vpop.f32.mrb[0].mxu0
        %470 = vdwg.mxu0
        %v471 = vlaneseq
        %v472 = vand.u32 %v471, 127
        %vm473 = vcmp.lt.s32.totalorder %v472, 64
        %v474 = vsel %vm473, 1, 0
        %v475 = vcvt.s32.f32 %v474
        %v476 = vmax.f32 %v468, 0.0
        %v477 = vand.u32 2147483647, %v468
        %v478 = vsub.f32 0.0, %v477
        %v479 = vmul.f32 %v478, 1.442695
        %v480 = vpow.pop %v479
        %v481 = vadd.f32 %v480, 1.0
        %v482 = vlog2.pop %v481
        %v483 = vmul.f32 %v482, 0.6931472
        %v484 = vadd.f32 %v476, %v483
        %v485 = vmul.f32 %v484, %v475
        %486 = vadd.xlane.f32.xlu0 %v485
        %v487 = vpop.xlane.xlu0 %486
        %v488 = vadd.f32 %v392, %v487
        %489 = vrot.lane.b32.xlu0 %v369, 127
        %v490 = vpop.permute.xlu0 %489
        %v492 = vmul.f32 %v488, %v490
        %vm493 = vcmask 7168
        %v494 = vsel %vm493, %v492, 0.0
        %v495 = vrot.slane %v494, 4
        %v496 = vadd.f32 %v494, %v495
        %v497 = vrot.slane %v496, 2
        %v498 = vadd.f32 %v496, %v497
        %v499 = vrot.slane %v498, 1
        %v500 = vadd.f32 %v498, %v499
        %vm501 = vcmask 15368
        %v502 = vsel %vm501, %v369, 0.0
        %v503 = vrot.slane %v502, 4
        %v504 = vadd.f32 %v502, %v503
        %v505 = vrot.slane %v504, 2
        %v506 = vadd.f32 %v504, %v505
        %v507 = vrot.slane %v506, 1
        %v508 = vadd.f32 %v506, %v507
        %v509 = vmax.f32 %v508, 1.0
        %511 = vrot.lane.b32.xlu0 %v509, 127
        %v512 = vpop.permute.xlu0 %511
        %v514 = vrcp.pop %v512
        %v515 = vmul.f32 %v500, %v514
        %vm516 = vcmask 0
        %517 = vst.msk [vmem:[%s358] sm:$0x1] %vm516, %v515
        %v518 = vmul.f32 %v362, %v362
        %519 = vset.pattern.permute.xlu0 1
        %520 = vperm.xlu0 %519, %v369
        %v521 = vpop.permute.xlu0 %520
        %v523 = vmul.f32 %v518, %v521
        %v524 = vsel %vm378, %v523, 0.0
        %525 = vadd.xlane.f32.xlu0 %v524
        %v526 = vpop.xlane.xlu0 %525
        %v527 = vrot.slane %v526, 4
        %v528 = vadd.f32 %v526, %v527
        %v529 = vrot.slane %v528, 2
        %v530 = vadd.f32 %v528, %v529
        %v531 = vrot.slane %v530, 1
        %v532 = vadd.f32 %v530, %v531
        %v533 = vrsqrt.pop %v532
        %v534 = vmul.f32 %v532, %v533
        %vm535 = vcmp.eq.f32.partialorder %v532, inf
        %v536 = vsel %vm535, %v532, %v534
        %vm537 = vcmp.eq.f32.partialorder %v532, 0.0
        %v538 = vand.u32 %v532, 2147483648
        %v539 = vsel %vm537, %v538, %v536
        %v540 = vmul.f32 %v363, %v363
        %v541 = vmul.f32 %v540, %v521
        %v542 = vsel %vm378, %v541, 0.0
        %543 = vadd.xlane.f32.xlu0 %v542
        %v544 = vpop.xlane.xlu0 %543
        %v545 = vrot.slane %v544, 4
        %v546 = vadd.f32 %v544, %v545
        %v547 = vrot.slane %v546, 2
        %v548 = vadd.f32 %v546, %v547
        %v549 = vrot.slane %v548, 1
        %v550 = vadd.f32 %v548, %v549
        %v551 = vrsqrt.pop %v550
        %v552 = vmul.f32 %v550, %v551
        %vm553 = vcmp.eq.f32.partialorder %v550, inf
        %v554 = vsel %vm553, %v550, %v552
        %vm555 = vcmp.eq.f32.partialorder %v550, 0.0
        %v556 = vand.u32 %v550, 2147483648
        %v557 = vsel %vm555, %v556, %v554
        %v558 = vadd.f32 %v539, %v557
        %v559 = vmul.f32 %v364, %v364
        %v560 = vmul.f32 %v365, %v365
        %v561 = vmul.f32 %v366, %v366
        %v562 = vmul.f32 %v367, %v367
        %563 = vadd.xlane.f32.xlu0 %v559
        %v564 = vpop.xlane.xlu0 %563
        %565 = vadd.xlane.f32.xlu0 %v560
        %v566 = vpop.xlane.xlu0 %565
        %567 = vadd.xlane.f32.xlu0 %v561
        %v568 = vpop.xlane.xlu0 %567
        %569 = vadd.xlane.f32.xlu0 %v562
        %v570 = vpop.xlane.xlu0 %569
        %v571 = vadd.f32 %v564, %v566
        %v572 = vadd.f32 %v571, %v568
        %v573 = vadd.f32 %v572, %v570
        %v574 = vrot.slane %v573, 4
        %v575 = vadd.f32 %v573, %v574
        %v576 = vrot.slane %v575, 2
        %v577 = vadd.f32 %v575, %v576
        %v578 = vrot.slane %v577, 1
        %v579 = vadd.f32 %v577, %v578
        %v580 = vrsqrt.pop %v579
        %v581 = vmul.f32 %v579, %v580
        %vm582 = vcmp.eq.f32.partialorder %v579, inf
        %v583 = vsel %vm582, %v579, %v581
        %vm584 = vcmp.eq.f32.partialorder %v579, 0.0
        %v585 = vand.u32 %v579, 2147483648
        %v586 = vsel %vm584, %v585, %v583
        %v587 = vadd.f32 %v558, %v586
        %588 = vst.msk [vmem:[%s361] sm:$0x1] %vm516, %v587
        %p589 = scmp.lt.s32.totalorder %s24, 2
        %s590 = scalar_select %p589, %s24, 2
        %s591 = scalar_lea.vmem %s5, %s590
        %p592 = scmp.lt.s32.totalorder %s24, 2
        %s593 = scalar_select %p592, %s24, 2
        %s594 = scalar_lea.vmem %s6, %s593
        // Predicated region
        $region49: #{tpu_custom_call.1} parent=39 // pred_check
          %p595 = pneg %p172
        $region50: #{tpu_custom_call.1} parent=39 // pred_check_branch
          %597 = sbr.rel (%p595) target = $region52
        $region51: #{tpu_custom_call.1} parent=39 // pred_region
          _
        $region52: #{tpu_custom_call.1} parent=39 // pred_fallthru
          _
        // Predicated region
        $region53: #{tpu_custom_call.1} parent=39 // pred_check
          %p598 = pneg %p198
        $region54: #{tpu_custom_call.1} parent=39 // pred_check_branch
          %600 = sbr.rel (%p598) target = $region56
        $region55: #{tpu_custom_call.1} parent=39 // pred_region
          _
        $region56: #{tpu_custom_call.1} parent=39 // pred_fallthru
          _
      $region40: #{tpu_custom_call.1} parent=5 // pred_fallthru
        _
      %p601 = scmp.le.s32.totalorder 2, %s19
      // Predicated region
      $region57: #{tpu_custom_call.1} parent=5 // pred_check
        %p602 = pneg %p601
      $region58: #{tpu_custom_call.1} parent=5 // pred_check_branch
        %604 = sbr.rel (%p602) target = $region60
      $region59: #{tpu_custom_call.1} parent=5 // pred_region
        %s605 = ssub.s32 %s19, 2
        // Predicated region
        $region61: #{tpu_custom_call.1} parent=59 // pred_check
          %p606 = pneg %p178
        $region62: #{tpu_custom_call.1} parent=59 // pred_check_branch
          %608 = sbr.rel (%p606) target = $region64
        $region63: #{tpu_custom_call.1} parent=59 // pred_region
          %p609 = scmp.lt.s32.totalorder %s25, 2
          %s610 = scalar_select %p609, %s25, 2
          %s611 = scalar_lea.vmem %s5, %s610
        $region64: #{tpu_custom_call.1} parent=59 // pred_fallthru
          _
        // Predicated region
        $region65: #{tpu_custom_call.1} parent=59 // pred_check
          %p612 = pneg %p204
        $region66: #{tpu_custom_call.1} parent=59 // pred_check_branch
          %614 = sbr.rel (%p612) target = $region68
        $region67: #{tpu_custom_call.1} parent=59 // pred_region
          %p615 = scmp.lt.s32.totalorder %s25, 2
          %s616 = scalar_select %p615, %s25, 2
          %s617 = scalar_lea.vmem %s6, %s616
        $region68: #{tpu_custom_call.1} parent=59 // pred_fallthru
          _
      $region60: #{tpu_custom_call.1} parent=5 // pred_fallthru
        _
    $region6: #{tpu_custom_call.1} parent=1 // loop_footer
      %s23 = sadd.s32 1, %s19
    $region7: #{tpu_custom_call.1} parent=1 // loop_footer_branch
      %18 = sbr.rel target = $region3
    $region8: #{tpu_custom_call.1} parent=1 // loop_exit
      _
    %618 = vsyncpa [#allocation3], 1
    %s619 = scalar_lea.sflag [#allocation3], 1
    %620 = vsyncpa %s619, 1
    %621 = vsyncpa [#allocation5], 1
    %s622 = scalar_lea.sflag [#allocation5], 1
    %623 = vsyncpa %s622, 1

</llo_original>
